<compile_context>
chip_gen: v7x
topology: tpu7x:2x2x1
jax: 0.10.0
libtpu: 0.0.40
codegen_flags: <defaults>
</compile_context>

<pallas_src>
import functools

import numpy as np
import jax
import jax.numpy as jnp
from jax.experimental import pallas as pl
from jax.experimental.pallas import tpu as pltpu

STATE_DIMM = 7


# ------------------------------ static layout -------------------------------
def _round_up(x, m=128):
    return ((x + m - 1) // m) * m


def _layout(H, A, T):
    """128-lane-aligned offsets for the packed weight/bias/output slabs."""
    G = 4 * H
    S0 = _round_up(G)          # whh segment width
    S1 = _round_up(H)          # w2 / b2 segment width
    S2 = _round_up(max(A, 1))  # w3 / b3 / a segment width
    off_w2 = S0
    off_w3 = S0 + S1
    w_width = S0 + S1 + S2
    off_b2 = _round_up(T * G)
    off_b3 = off_b2 + S1
    b_width = off_b3 + S2
    Sh = _round_up(H)
    off_out_c = Sh
    off_out_a = 2 * Sh
    out_width = 2 * Sh + S2
    return dict(off_w2=off_w2, off_w3=off_w3, w_width=w_width,
                off_b2=off_b2, off_b3=off_b3, b_width=b_width,
                off_out_c=off_out_c, off_out_a=off_out_a, out_width=out_width)


# ------------------------------- Pallas kernel ------------------------------
def actor_kernel(xs_ref, hc_ref, wih_ref, w_ref, b_ref, out_ref, *,
                 act_dim, max_action, off_w2, off_w3, off_b2, off_b3,
                 off_out_c, off_out_a):
    B, TF = xs_ref.shape
    T = TF // STATE_DIMM
    H = hc_ref.shape[1] // 2
    G = 4 * H
    A = act_dim

    # Lane-aligned ref slices -> plain aligned vector loads (no XLU rotates,
    # no mid-vreg masked selects).
    whh = w_ref[:, 0:G]
    w2 = w_ref[:, off_w2:off_w2 + H]
    w3 = w_ref[:, off_w3:off_w3 + A]
    b_lstm_big = b_ref[:, 0:T * G]
    b2 = b_ref[:, off_b2:off_b2 + H]
    b3 = b_ref[:, off_b3:off_b3 + A]

    # Hoisted input projection for ALL timesteps in one MXU call:
    # (B, T*7) @ block-diag(wih) (T*7, T*4H).  Carry-free -> off the serial
    # recurrent critical path.  Per-step slices below are 128-lane aligned.
    gx_big = jnp.dot(xs_ref[...], wih_ref[...],
                     preferred_element_type=jnp.float32) + b_lstm_big   # (B, T*4H)

    h = hc_ref[:, 0:H]
    c = hc_ref[:, H:2 * H]

    # Reverse recurrence i = T-1 .. 1; timestep 0 is INTENTIONALLY skipped to
    # reproduce the PyTorch loop exactly.  Fully unrolled (T static, tiny) so
    # the scheduler sees the whole serial chain.
    # TODO(synk): whh could be held resident in the MXU across the chain via
    # pltpu.matmul_push_rhs / matmul_acc_lhs / matmul_pop; kept as jnp.dot for
    # guaranteed, portable lowering at these tiny shapes (v5e/v6e/v7x).
    for i in range(T - 1, 0, -1):
        gates = gx_big[:, i * G:(i + 1) * G] + jnp.dot(
            h, whh, preferred_element_type=jnp.float32)                 # (B, 4H)
        # Activate the full (B, 4H) vreg once per function: 2 EUP pushes here
        # (+ tanh(c) below) instead of 5 per step on the serial chain.
        sig = jax.nn.sigmoid(gates)
        tnh = jnp.tanh(gates)
        i_g = sig[:, 0 * H:1 * H]
        f_g = sig[:, 1 * H:2 * H]
        g_g = tnh[:, 2 * H:3 * H]
        o_g = sig[:, 3 * H:4 * H]
        c = f_g * c + i_g * g_g
        h = o_g * jnp.tanh(c)

    # MLP head: a = max_action * tanh(l3(relu(l2(h))))
    z = jnp.maximum(jnp.dot(h, w2, preferred_element_type=jnp.float32) + b2, 0.0)
    a = max_action * jnp.tanh(
        jnp.dot(z, w3, preferred_element_type=jnp.float32) + b3)

    # Single consolidated output slab (one output DMA descriptor); every
    # segment starts on a 128-lane boundary.
    out_ref[:, 0:H] = h
    out_ref[:, off_out_c:off_out_c + H] = c
    out_ref[:, off_out_a:off_out_a + A] = a


# -------------------------------- JAX wrapper -------------------------------
def actor_forward(state, hidden, packed, *, action_dim, max_action):
    """Replicates Actor.forward (non-recurrent branch). Returns (a, (h, c))."""
    B = state.shape[0]
    xs = state.reshape(B, -1).astype(jnp.float32)        # (B, T*7) — no transpose
    T = xs.shape[1] // STATE_DIMM
    assert T >= 2, "forward loop requires at least 2 timesteps (i = T-1 .. 1)"
    H = hidden[0].shape[-1]
    A = action_dim
    lay = _layout(H, A, T)

    # Guard the hard-coded slab offsets against a mismatched packing.
    assert packed["wih_big"].shape == (T * STATE_DIMM, T * 4 * H)
    assert packed["w_slab"].shape == (H, lay["w_width"])
    assert packed["b_slab"].shape == (1, lay["b_width"])

    hc0 = jnp.concatenate([hidden[0][0], hidden[1][0]], axis=1)   # (B, 2H), fuses under jit

    kernel = functools.partial(
        actor_kernel, act_dim=A, max_action=float(max_action),
        off_w2=lay["off_w2"], off_w3=lay["off_w3"],
        off_b2=lay["off_b2"], off_b3=lay["off_b3"],
        off_out_c=lay["off_out_c"], off_out_a=lay["off_out_a"])

    vmem = pl.BlockSpec(memory_space=pltpu.MemorySpace.VMEM)
    out = pl.pallas_call(
        kernel,
        out_shape=jax.ShapeDtypeStruct((B, lay["out_width"]), jnp.float32),
        in_specs=[vmem] * 5,
        out_specs=vmem,
    )(xs, hc0, packed["wih_big"], packed["w_slab"], packed["b_slab"])

    h = out[:, 0:H]
    c = out[:, lay["off_out_c"]:lay["off_out_c"] + H]
    a = out[:, lay["off_out_a"]:lay["off_out_a"] + A]
    # PyTorch shapes: a (B, 1, action_dim); hidden ((1,B,H), (1,B,H)).
    return a.reshape(B, 1, A), (h.reshape(1, B, H), c.reshape(1, B, H))


# ----------------------------- Pure-JAX reference ---------------------------
def actor_reference(state, hidden, params, max_action):
    B = state.shape[0]
    H = hidden[0].shape[-1]
    state_r = state.reshape(B, -1, STATE_DIMM)
    T = state_r.shape[1]

    h, c = hidden[0][0], hidden[1][0]
    for i in range(T - 1, 0, -1):
        x = state_r[:, i, :]
        gates = x @ params["wih"] + h @ params["whh"] + params["b_lstm"]
        i_g = jax.nn.sigmoid(gates[:, 0 * H:1 * H])
        f_g = jax.nn.sigmoid(gates[:, 1 * H:2 * H])
        g_g = jnp.tanh(gates[:, 2 * H:3 * H])
        o_g = jax.nn.sigmoid(gates[:, 3 * H:4 * H])
        c = f_g * c + i_g * g_g
        h = o_g * jnp.tanh(c)

    z = jnp.maximum(h @ params["w2"] + params["b2"], 0.0)
    a = max_action * jnp.tanh(z @ params["w3"] + params["b3"])
    return a.reshape(B, 1, -1), (h.reshape(1, B, H), c.reshape(1, B, H))


# -------------------------------- Param init --------------------------------
def make_params(key, state_dim, action_dim, hidden_dim):
    """Deterministic init matching torch's default uniform(-1/sqrt(fan), +)."""
    H = hidden_dim
    ks = jax.random.split(key, 8)

    def u(k, shape, fan):
        bound = 1.0 / np.sqrt(fan)
        return jax.random.uniform(k, shape, jnp.float32, -bound, bound)

    return dict(
        # LSTM l1 (weights stored transposed: (in, 4H)), gate order [i,f,g,o]
        wih=u(ks[0], (state_dim, 4 * H), H),
        whh=u(ks[1], (H, 4 * H), H),
        b_lstm=u(ks[2], (1, 4 * H), H) + u(ks[3], (1, 4 * H), H),   # b_ih + b_hh
        # Linear l2 (H->H), l3 (H->action_dim)
        w2=u(ks[4], (H, H), H), b2=u(ks[5], (1, H), H),
        w3=u(ks[6], (H, action_dim), H), b3=u(ks[7], (1, action_dim), H),
    )


def pack_params(params, n_steps):
    """Pack weights into kernel operands (done ONCE, outside the forward)."""
    H = params["whh"].shape[0]
    A = params["w3"].shape[1]
    T = n_steps
    lay = _layout(H, A, T)

    def pad_to(x, width):
        return jnp.pad(x, ((0, 0), (0, width - x.shape[1])))

    # Block-diagonal input projection: (T*7, T*4H) so the kernel can consume
    # state.reshape(B, T*7) directly (no wrapper transpose).
    wih_big = jax.scipy.linalg.block_diag(*([params["wih"]] * T))
    # Weight slab: [whh | w2 | w3], each segment padded to a 128-lane boundary.
    w_slab = jnp.concatenate(
        [pad_to(params["whh"], lay["off_w2"]),
         pad_to(params["w2"], lay["off_w3"] - lay["off_w2"]),
         pad_to(params["w3"], lay["w_width"] - lay["off_w3"])], axis=1)
    # Bias slab: [b_lstm tiled over T | b2 | b3], 128-lane aligned segments.
    b_lstm_big = jnp.tile(params["b_lstm"], (1, T))                  # (1, T*4H)
    b_slab = jnp.concatenate(
        [pad_to(b_lstm_big, lay["off_b2"]),
         pad_to(params["b2"], lay["off_b3"] - lay["off_b2"]),
         pad_to(params["b3"], lay["b_width"] - lay["off_b3"])], axis=1)
    return dict(wih_big=wih_big, w_slab=w_slab, b_slab=b_slab)


# ----------------------------------- main ------------------------------------
if __name__ == "__main__":
    # B=8 fills all 8 sublanes of every vreg (same cycle count as B=2).
    B, T, A, H = 8, 4, 3, 32          # batch, time, action_dim, hidden
    MAX_ACTION = 2.0

    key = jax.random.PRNGKey(0)
    kp, ks, kh, kc = jax.random.split(key, 4)

    params = make_params(kp, STATE_DIMM, A, H)
    packed = pack_params(params, n_steps=T)

    state = jax.random.normal(ks, (B, 1, T * STATE_DIMM), jnp.float32)
    hidden = (jax.random.normal(kh, (1, B, H), jnp.float32),
              jax.random.normal(kc, (1, B, H), jnp.float32))

    fwd = jax.jit(functools.partial(actor_forward, action_dim=A,
                                    max_action=MAX_ACTION))
    a, (h, c) = fwd(state, hidden, packed)
    a = jax.block_until_ready(a)
    h = jax.block_until_ready(h)
    c = jax.block_until_ready(c)

    a_ref, (h_ref, c_ref) = actor_reference(state, hidden, params, MAX_ACTION)
    np.testing.assert_allclose(np.asarray(a), np.asarray(a_ref), rtol=1e-5, atol=1e-5)
    np.testing.assert_allclose(np.asarray(h), np.asarray(h_ref), rtol=1e-5, atol=1e-5)
    np.testing.assert_allclose(np.asarray(c), np.asarray(c_ref), rtol=1e-5, atol=1e-5)

    print("KERNEL_OK")
</pallas_src>

<mosaic_0001>
module attributes {stable_mosaic.version = 11 : i64} {
  func.func @actor_kernel(%arg0: memref<8x28xf32, #tpu.memory_space<vmem>>, %arg1: memref<8x64xf32, #tpu.memory_space<vmem>>, %arg2: memref<28x512xf32, #tpu.memory_space<vmem>>, %arg3: memref<32x384xf32, #tpu.memory_space<vmem>>, %arg4: memref<1x768xf32, #tpu.memory_space<vmem>>, %arg5: memref<8x384xf32, #tpu.memory_space<vmem>>) attributes {dimension_semantics = [], scalar_prefetch = 0 : i64, scratch_operands = 0 : i64, tpu.core_type = #tpu.core_type<tc>} {
    %c0 = arith.constant 0 : index
    %c0_0 = arith.constant 0 : index
    %0 = vector.load %arg3[%c0, %c0_0] : memref<32x384xf32, #tpu.memory_space<vmem>>, vector<32x128xf32>
    %c0_1 = arith.constant 0 : index
    %c128 = arith.constant 128 : index
    %1 = vector.load %arg3[%c0_1, %c128] : memref<32x384xf32, #tpu.memory_space<vmem>>, vector<32x32xf32>
    %c0_2 = arith.constant 0 : index
    %c256 = arith.constant 256 : index
    %2 = vector.load %arg3[%c0_2, %c256] : memref<32x384xf32, #tpu.memory_space<vmem>>, vector<32x3xf32>
    %c0_3 = arith.constant 0 : index
    %c0_4 = arith.constant 0 : index
    %3 = vector.load %arg4[%c0_3, %c0_4] : memref<1x768xf32, #tpu.memory_space<vmem>>, vector<1x512xf32>
    %c0_5 = arith.constant 0 : index
    %c512 = arith.constant 512 : index
    %4 = vector.load %arg4[%c0_5, %c512] : memref<1x768xf32, #tpu.memory_space<vmem>>, vector<1x32xf32>
    %c0_6 = arith.constant 0 : index
    %c640 = arith.constant 640 : index
    %5 = vector.load %arg4[%c0_6, %c640] : memref<1x768xf32, #tpu.memory_space<vmem>>, vector<1x3xf32>
    %c0_7 = arith.constant 0 : index
    %c0_8 = arith.constant 0 : index
    %6 = vector.load %arg0[%c0_7, %c0_8] : memref<8x28xf32, #tpu.memory_space<vmem>>, vector<8x28xf32>
    %c0_9 = arith.constant 0 : index
    %c0_10 = arith.constant 0 : index
    %7 = vector.load %arg2[%c0_9, %c0_10] : memref<28x512xf32, #tpu.memory_space<vmem>>, vector<28x512xf32>
    %cst = arith.constant dense<0.000000e+00> : vector<8x512xf32>
    %8 = tpu.matmul %6, %7, %cst {dimension_numbers = #tpu.dot_dimension_numbers<[1], [0], [0], [1], [0, 0, 1, 1], [], []>} : vector<8x28xf32>, vector<28x512xf32>, vector<8x512xf32> -> vector<8x512xf32>
    %9 = vector.broadcast %3 : vector<1x512xf32> to vector<8x512xf32>
    %10 = arith.addf %8, %9 : vector<8x512xf32>
    %c0_11 = arith.constant 0 : index
    %c0_12 = arith.constant 0 : index
    %11 = vector.load %arg1[%c0_11, %c0_12] : memref<8x64xf32, #tpu.memory_space<vmem>>, vector<8x32xf32>
    %c0_13 = arith.constant 0 : index
    %c32 = arith.constant 32 : index
    %12 = vector.load %arg1[%c0_13, %c32] : memref<8x64xf32, #tpu.memory_space<vmem>>, vector<8x32xf32>
    %13 = vector.extract_strided_slice %10 {offsets = [0, 384], sizes = [8, 128], strides = [1, 1]} : vector<8x512xf32> to vector<8x128xf32>
    %cst_14 = arith.constant dense<0.000000e+00> : vector<8x128xf32>
    %14 = tpu.matmul %11, %0, %cst_14 {dimension_numbers = #tpu.dot_dimension_numbers<[1], [0], [0], [1], [0, 0, 1, 1], [], []>} : vector<8x32xf32>, vector<32x128xf32>, vector<8x128xf32> -> vector<8x128xf32>
    %15 = arith.addf %13, %14 : vector<8x128xf32>
    %16 = arith.negf %15 : vector<8x128xf32>
    %17 = math.exp %16 : vector<8x128xf32>
    %cst_15 = arith.constant 1.000000e+00 : f32
    %18 = vector.broadcast %cst_15 : f32 to vector<8x128xf32>
    %19 = arith.addf %18, %17 : vector<8x128xf32>
    %20 = arith.divf %18, %19 : vector<8x128xf32>
    %21 = math.tanh %15 : vector<8x128xf32>
    %22 = vector.extract_strided_slice %20 {offsets = [0, 0], sizes = [8, 32], strides = [1, 1]} : vector<8x128xf32> to vector<8x32xf32>
    %23 = vector.extract_strided_slice %20 {offsets = [0, 32], sizes = [8, 32], strides = [1, 1]} : vector<8x128xf32> to vector<8x32xf32>
    %24 = vector.extract_strided_slice %21 {offsets = [0, 64], sizes = [8, 32], strides = [1, 1]} : vector<8x128xf32> to vector<8x32xf32>
    %25 = vector.extract_strided_slice %20 {offsets = [0, 96], sizes = [8, 32], strides = [1, 1]} : vector<8x128xf32> to vector<8x32xf32>
    %26 = arith.mulf %23, %12 : vector<8x32xf32>
    %27 = arith.mulf %22, %24 : vector<8x32xf32>
    %28 = arith.addf %26, %27 : vector<8x32xf32>
    %29 = math.tanh %28 : vector<8x32xf32>
    %30 = arith.mulf %25, %29 : vector<8x32xf32>
    %31 = vector.extract_strided_slice %10 {offsets = [0, 256], sizes = [8, 128], strides = [1, 1]} : vector<8x512xf32> to vector<8x128xf32>
    %cst_16 = arith.constant dense<0.000000e+00> : vector<8x128xf32>
    %32 = tpu.matmul %30, %0, %cst_16 {dimension_numbers = #tpu.dot_dimension_numbers<[1], [0], [0], [1], [0, 0, 1, 1], [], []>} : vector<8x32xf32>, vector<32x128xf32>, vector<8x128xf32> -> vector<8x128xf32>
    %33 = arith.addf %31, %32 : vector<8x128xf32>
    %34 = arith.negf %33 : vector<8x128xf32>
    %35 = math.exp %34 : vector<8x128xf32>
    %cst_17 = arith.constant 1.000000e+00 : f32
    %36 = vector.broadcast %cst_17 : f32 to vector<8x128xf32>
    %37 = arith.addf %36, %35 : vector<8x128xf32>
    %38 = arith.divf %36, %37 : vector<8x128xf32>
    %39 = math.tanh %33 : vector<8x128xf32>
    %40 = vector.extract_strided_slice %38 {offsets = [0, 0], sizes = [8, 32], strides = [1, 1]} : vector<8x128xf32> to vector<8x32xf32>
    %41 = vector.extract_strided_slice %38 {offsets = [0, 32], sizes = [8, 32], strides = [1, 1]} : vector<8x128xf32> to vector<8x32xf32>
    %42 = vector.extract_strided_slice %39 {offsets = [0, 64], sizes = [8, 32], strides = [1, 1]} : vector<8x128xf32> to vector<8x32xf32>
    %43 = vector.extract_strided_slice %38 {offsets = [0, 96], sizes = [8, 32], strides = [1, 1]} : vector<8x128xf32> to vector<8x32xf32>
    %44 = arith.mulf %41, %28 : vector<8x32xf32>
    %45 = arith.mulf %40, %42 : vector<8x32xf32>
    %46 = arith.addf %44, %45 : vector<8x32xf32>
    %47 = math.tanh %46 : vector<8x32xf32>
    %48 = arith.mulf %43, %47 : vector<8x32xf32>
    %49 = vector.extract_strided_slice %10 {offsets = [0, 128], sizes = [8, 128], strides = [1, 1]} : vector<8x512xf32> to vector<8x128xf32>
    %cst_18 = arith.constant dense<0.000000e+00> : vector<8x128xf32>
    %50 = tpu.matmul %48, %0, %cst_18 {dimension_numbers = #tpu.dot_dimension_numbers<[1], [0], [0], [1], [0, 0, 1, 1], [], []>} : vector<8x32xf32>, vector<32x128xf32>, vector<8x128xf32> -> vector<8x128xf32>
    %51 = arith.addf %49, %50 : vector<8x128xf32>
    %52 = arith.negf %51 : vector<8x128xf32>
    %53 = math.exp %52 : vector<8x128xf32>
    %cst_19 = arith.constant 1.000000e+00 : f32
    %54 = vector.broadcast %cst_19 : f32 to vector<8x128xf32>
    %55 = arith.addf %54, %53 : vector<8x128xf32>
    %56 = arith.divf %54, %55 : vector<8x128xf32>
    %57 = math.tanh %51 : vector<8x128xf32>
    %58 = vector.extract_strided_slice %56 {offsets = [0, 0], sizes = [8, 32], strides = [1, 1]} : vector<8x128xf32> to vector<8x32xf32>
    %59 = vector.extract_strided_slice %56 {offsets = [0, 32], sizes = [8, 32], strides = [1, 1]} : vector<8x128xf32> to vector<8x32xf32>
    %60 = vector.extract_strided_slice %57 {offsets = [0, 64], sizes = [8, 32], strides = [1, 1]} : vector<8x128xf32> to vector<8x32xf32>
    %61 = vector.extract_strided_slice %56 {offsets = [0, 96], sizes = [8, 32], strides = [1, 1]} : vector<8x128xf32> to vector<8x32xf32>
    %62 = arith.mulf %59, %46 : vector<8x32xf32>
    %63 = arith.mulf %58, %60 : vector<8x32xf32>
    %64 = arith.addf %62, %63 : vector<8x32xf32>
    %65 = math.tanh %64 : vector<8x32xf32>
    %66 = arith.mulf %61, %65 : vector<8x32xf32>
    %cst_20 = arith.constant dense<0.000000e+00> : vector<8x32xf32>
    %67 = tpu.matmul %66, %1, %cst_20 {dimension_numbers = #tpu.dot_dimension_numbers<[1], [0], [0], [1], [0, 0, 1, 1], [], []>} : vector<8x32xf32>, vector<32x32xf32>, vector<8x32xf32> -> vector<8x32xf32>
    %68 = vector.broadcast %4 : vector<1x32xf32> to vector<8x32xf32>
    %69 = arith.addf %67, %68 : vector<8x32xf32>
    %cst_21 = arith.constant 0.000000e+00 : f32
    %70 = vector.broadcast %cst_21 : f32 to vector<8x32xf32>
    %71 = arith.maximumf %69, %70 : vector<8x32xf32>
    %cst_22 = arith.constant dense<0.000000e+00> : vector<8x3xf32>
    %72 = tpu.matmul %71, %2, %cst_22 {dimension_numbers = #tpu.dot_dimension_numbers<[1], [0], [0], [1], [0, 0, 1, 1], [], []>} : vector<8x32xf32>, vector<32x3xf32>, vector<8x3xf32> -> vector<8x3xf32>
    %73 = vector.broadcast %5 : vector<1x3xf32> to vector<8x3xf32>
    %74 = arith.addf %72, %73 : vector<8x3xf32>
    %75 = math.tanh %74 : vector<8x3xf32>
    %cst_23 = arith.constant 2.000000e+00 : f32
    %76 = vector.broadcast %cst_23 : f32 to vector<8x3xf32>
    %77 = arith.mulf %76, %75 : vector<8x3xf32>
    %c0_24 = arith.constant 0 : index
    %c0_25 = arith.constant 0 : index
    %78 = vector.load %arg5[%c0_24, %c0_25] : memref<8x384xf32, #tpu.memory_space<vmem>>, vector<8x32xf32>
    tpu.vector_store %arg5[%c0_24, %c0_25], %66 {strides = array<i32>} : memref<8x384xf32, #tpu.memory_space<vmem>>, vector<8x32xf32>,
    %c0_26 = arith.constant 0 : index
    %c128_27 = arith.constant 128 : index
    %79 = vector.load %arg5[%c0_26, %c128_27] : memref<8x384xf32, #tpu.memory_space<vmem>>, vector<8x32xf32>
    tpu.vector_store %arg5[%c0_26, %c128_27], %64 {strides = array<i32>} : memref<8x384xf32, #tpu.memory_space<vmem>>, vector<8x32xf32>,
    %c0_28 = arith.constant 0 : index
    %c256_29 = arith.constant 256 : index
    %80 = vector.load %arg5[%c0_28, %c256_29] : memref<8x384xf32, #tpu.memory_space<vmem>>, vector<8x3xf32>
    tpu.vector_store %arg5[%c0_28, %c256_29], %77 {strides = array<i32>} : memref<8x384xf32, #tpu.memory_space<vmem>>, vector<8x3xf32>,
    return
  }
}

</mosaic_0001>

<llo_original>
// kernel: actor_forward.1
$region0: #{actor_forward.1}
  #allocation0 [shape = 'u32[]', space=smem, size = 0x4, offset = 0x4, fixed_abs, tag = 'smem constant byte address 0x4 - core index']
  #allocation1 [shape = 'u32[144,128]{1,0:T(1,128)}', space=vmem, size = 0x12000, scoped, tag = 'internal scratch']
  %s0 = inlined_call_operand.vmem [shape: f32[8,28], index: 0, kind: input, shape index: {}]
  %s1 = inlined_call_operand.vmem [shape: f32[8,64], index: 1, kind: input, shape index: {}]
  %s2 = inlined_call_operand.hbm [shape: f32[28,512], index: 2, kind: input, shape index: {}]
  %s3 = inlined_call_operand.hbm [shape: f32[32,384], index: 3, kind: input, shape index: {}]
  %s4 = inlined_call_operand.vmem [shape: f32[1,768], index: 4, kind: input, shape index: {}]
  %s5 = inlined_call_operand.vmem [shape: f32[8,384], index: 5, kind: output, shape index: {}]
  %s6 = sld [smem:[#allocation0]]
  $region38: #{actor_forward.1} parent=0
    _
  %s8 = ssub.s32 1, %s6
  %s9 = scalar_select 0, %s8, %s6
  $region1: #{actor_forward.1} parent=0
    #allocation2 [shape = 'u8[65536]{0}', space=vmem, size = 0x10000, scoped, tag = 'input window, operand 2, single buffered']
    #allocation3 [shape = 's32[1]{0}', space=sflag, size = 0x4, scoped, tag = 'scoped memory for actor_forward.1']
    #allocation4 [shape = 'u8[49152]{0}', space=vmem, size = 0xc000, scoped, tag = 'input window, operand 3, single buffered']
    #allocation5 [shape = 's32[1]{0}', space=sflag, size = 0x4, scoped, tag = 'scoped memory for actor_forward.1']
    %10 = vsyncpa [#allocation3], 0
    %11 = vsyncpa [#allocation5], 0
    // Predicated region
    $region2: #{actor_forward.1} parent=1 // pred_check
      _
    $region3: #{actor_forward.1} parent=1 // pred_check_branch
      %13 = sbr.rel (0) target = $region5
    $region4: #{actor_forward.1} parent=1 // pred_region
      _
    $region5: #{actor_forward.1} parent=1 // pred_fallthru
      _
    // Predicated region
    $region6: #{actor_forward.1} parent=1 // pred_check
      _
    $region7: #{actor_forward.1} parent=1 // pred_check_branch
      %15 = sbr.rel (0) target = $region9
    $region8: #{actor_forward.1} parent=1 // pred_region
      _
    $region9: #{actor_forward.1} parent=1 // pred_fallthru
      _
    // Predicated region
    $region10: #{actor_forward.1} parent=1 // pred_check
      _
    $region11: #{actor_forward.1} parent=1 // pred_check_branch
      %17 = sbr.rel (0) target = $region13
    $region12: #{actor_forward.1} parent=1 // pred_region
      %s19 = ssub.s32 2048, 2048
      %20 = vsyncadd [#allocation3], %s19
      %s21 = sshll.u32 [#allocation2], 4
      %s22 = int_to_ptr.vmem [resolvable:$true] %s21
      %27 = dma.hbm_to_vmem [thread:$0]  %s2, 2048, %s22, [#allocation3], 512, 512, 32
    $region13: #{actor_forward.1} parent=1 // pred_fallthru
      _
    // Predicated region
    $region14: #{actor_forward.1} parent=1 // pred_check
      _
    $region15: #{actor_forward.1} parent=1 // pred_check_branch
      %29 = sbr.rel (0) target = $region17
    $region16: #{actor_forward.1} parent=1 // pred_region
      %s31 = ssub.s32 1536, 1536
      %32 = vsyncadd [#allocation5], %s31
      %s33 = sshll.u32 [#allocation4], 4
      %s34 = int_to_ptr.vmem [resolvable:$true] %s33
      %39 = dma.hbm_to_vmem [thread:$0]  %s3, 1536, %s34, [#allocation5], 384, 384, 24
    $region17: #{actor_forward.1} parent=1 // pred_fallthru
      _
    // Predicated region
    $region18: #{actor_forward.1} parent=1 // pred_check
      _
    $region19: #{actor_forward.1} parent=1 // pred_check_branch
      %41 = sbr.rel (0) target = $region21
    $region20: #{actor_forward.1} parent=1 // pred_region
      _
    $region21: #{actor_forward.1} parent=1 // pred_fallthru
      _
    // Predicated region
    $region22: #{actor_forward.1} parent=1 // pred_check
      _
    $region23: #{actor_forward.1} parent=1 // pred_check_branch
      %43 = sbr.rel (0) target = $region25
    $region24: #{actor_forward.1} parent=1 // pred_region
      %44 = dma.done [#allocation3], 2048
    $region25: #{actor_forward.1} parent=1 // pred_fallthru
      _
    // Predicated region
    $region26: #{actor_forward.1} parent=1 // pred_check
      _
    $region27: #{actor_forward.1} parent=1 // pred_check_branch
      %46 = sbr.rel (0) target = $region29
    $region28: #{actor_forward.1} parent=1 // pred_region
      %47 = dma.done [#allocation5], 1536
    $region29: #{actor_forward.1} parent=1 // pred_fallthru
      _
    %v48 = vld [vmem:[#allocation4] sm:$0xff]
    %v49 = vld [vmem:[#allocation4 + $0x18] sm:$0xff]
    %v50 = vld [vmem:[#allocation4 + $0x30] sm:$0xff]
    %v51 = vld [vmem:[#allocation4 + $0x48] sm:$0xff]
    %v52 = vld [vmem:[#allocation4 + $0x8] sm:$0xff]
    %v53 = vld [vmem:[#allocation4 + $0x20] sm:$0xff]
    %v54 = vld [vmem:[#allocation4 + $0x38] sm:$0xff]
    %v55 = vld [vmem:[#allocation4 + $0x50] sm:$0xff]
    %v56 = vld [vmem:[#allocation4 + $0x10] sm:$0xff]
    %v57 = vld [vmem:[#allocation4 + $0x28] sm:$0xff]
    %v58 = vld [vmem:[#allocation4 + $0x40] sm:$0xff]
    %v59 = vld [vmem:[#allocation4 + $0x58] sm:$0xff]
    %v60 = vld [vmem:[%s4] sm:$0xf]
    %v61 = vld [vmem:[%s4 + $0x4] sm:$0x1]
    %v62 = vld [vmem:[%s4 + $0x5] sm:$0x1]
    %v63 = vld [vmem:[%s0] sm:$0xff]
    %v64 = vld [vmem:[#allocation2] sm:$0xff]
    %v65 = vld [vmem:[#allocation2 + $0x8] sm:$0xff]
    %v66 = vld [vmem:[#allocation2 + $0x10] sm:$0xff]
    %v67 = vld [vmem:[#allocation2 + $0x18] sm:$0xff]
    %v68 = vld [vmem:[#allocation2 + $0x20] sm:$0xff]
    %v69 = vld [vmem:[#allocation2 + $0x28] sm:$0xff]
    %v70 = vld [vmem:[#allocation2 + $0x30] sm:$0xff]
    %v71 = vld [vmem:[#allocation2 + $0x38] sm:$0xff]
    %v72 = vld [vmem:[#allocation2 + $0x40] sm:$0xff]
    %v73 = vld [vmem:[#allocation2 + $0x48] sm:$0xff]
    %v74 = vld [vmem:[#allocation2 + $0x50] sm:$0xff]
    %v75 = vld [vmem:[#allocation2 + $0x58] sm:$0xff]
    %v76 = vld [vmem:[#allocation2 + $0x60] sm:$0xf]
    %v77 = vld [vmem:[#allocation2 + $0x68] sm:$0xf]
    %v78 = vld [vmem:[#allocation2 + $0x70] sm:$0xf]
    %v79 = vld [vmem:[#allocation2 + $0x78] sm:$0xf]
    %v81 = vlaneseq
    %v82 = vshrl.u32 %v81, 7
    %v83 = vsub.s32 1, %v82
    %v84 = vrot.slane %v60, %v83
    %v85 = vlaneseq
    %v86 = vshrl.u32 %v85, 7
    %v87 = vsub.s32 2, %v86
    %v88 = vrot.slane %v60, %v87
    %v89 = vlaneseq
    %v90 = vshrl.u32 %v89, 7
    %v91 = vsub.s32 3, %v90
    %v92 = vrot.slane %v60, %v91
    %vm96 = vcmask 228352
    %v98 = vsel %vm96, %v63, 0
    %vm100 = vcmask 1043456
    %v102 = vsel %vm100, %v76, 0
    %v105 = vsel %vm100, %v77, 0
    %v108 = vsel %vm100, %v78, 0
    %v111 = vsel %vm100, %v79, 0
    %113 = vmatprep.subr.mxu0 %v65
    %114 = vmatpush1.msra.mxu0 %v64
    %115 = vmatprep.subr.mxu0 %v69
    %116 = vmatpush1.msra.mxu0 %v68
    %117 = vmatprep.subr.mxu0 %v73
    %118 = vmatpush1.msra.mxu0 %v72
    %119 = vmatprep.subr.mxu0 %v105
    %120 = vmatpush1.msra.mxu0 %v102
    %121 = vmatprep.subr.mxu0 0.0
    %122 = vmatpush1.msra.mxu0 0.0
    %123 = vmatprep.subr.mxu0 0.0
    %124 = vmatpush1.msra.mxu0 0.0
    %125 = vmatprep.subr.mxu0 0.0
    %126 = vmatpush1.msra.mxu0 0.0
    %127 = vmatprep.subr.mxu0 0.0
    %128 = vmatpush1.msra.mxu0 0.0
    %129 = vmatprep.subr.mxu0 0.0
    %130 = vmatpush1.msra.mxu0 0.0
    %131 = vmatprep.subr.mxu0 0.0
    %132 = vmatpush1.msra.mxu0 0.0
    %133 = vmatprep.subr.mxu0 0.0
    %134 = vmatpush1.msra.mxu0 0.0
    %135 = vmatprep.subr.mxu0 0.0
    %136 = vmatpush1.msra.mxu0 0.0
    %137 = vmatprep.subr.mxu0 0.0
    %138 = vmatpush1.msra.mxu0 0.0
    %139 = vmatprep.subr.mxu0 0.0
    %140 = vmatpush1.msra.mxu0 0.0
    %141 = vmatprep.subr.mxu0 0.0
    %142 = vmatpush1.msra.mxu0 0.0
    %143 = vmatprep.subr.mxu0 0.0
    %144 = vmatpush1.msra.mxu0 0.0
    %145 = vmatprep.subr.mxu0 0.0
    %146 = vmatpush1.msra.mxu0 0.0
    %147 = vmatprep.subr.mxu0 0.0
    %148 = vmatpush1.msra.mxu0 0.0
    %149 = vmatprep.subr.mxu0 0.0
    %150 = vmatpush1.msra.mxu0 0.0
    %151 = vmatprep.subr.mxu0 0.0
    %152 = vmatpush1.msra.mxu0 0.0
    %153 = vmatprep.subr.mxu0 0.0
    %154 = vmatpush1.msra.mxu0 0.0
    %155 = vmatprep.subr.mxu0 0.0
    %156 = vmatpush1.msra.mxu0 0.0
    %157 = vmatprep.subr.mxu0 0.0
    %158 = vmatpush1.msra.mxu0 0.0
    %159 = vmatprep.subr.mxu0 0.0
    %160 = vmatpush1.msra.mxu0 0.0
    %161 = vmatprep.subr.mxu0 0.0
    %162 = vmatpush1.msra.mxu0 0.0
    %163 = vmatprep.subr.mxu0 0.0
    %164 = vmatpush1.msra.mxu0 0.0
    %165 = vmatprep.subr.mxu0 0.0
    %166 = vmatpush1.msra.mxu0 0.0
    %167 = vmatprep.subr.mxu0 0.0
    %168 = vmatpush1.msra.mxu0 0.0
    %169 = vmatprep.subr.mxu0 0.0
    %170 = vmatpush1.msra.mxu0 0.0
    %171 = vmatprep.subr.mxu0 0.0
    %172 = vmatpush1.msra.mxu0 0.0
    %173 = vmatprep.subr.mxu0 0.0
    %174 = vmatpush1.msra.mxu0 0.0
    %175 = vmatprep.subr.mxu0 0.0
    %176 = vmatpush1.msra.mxu0 0.0
    %177 = vmatprep.mubr.f32.mxu0 0.0
    %178 = vmatmul.mubr.f32.gmra.mrb[0].mxu0 %v98
    %v179 = vpop.f32.mrb[0].mxu0
    %v180 = vpop.f32.mrb[0].mxu0
    %v181 = vadd.f32 %v84, %v180
    %182 = vdwg.mxu0
    %183 = vmatprep.subr.mxu0 %v67
    %184 = vmatpush1.msra.mxu0 %v66
    %185 = vmatprep.subr.mxu0 %v71
    %186 = vmatpush1.msra.mxu0 %v70
    %187 = vmatprep.subr.mxu0 %v75
    %188 = vmatpush1.msra.mxu0 %v74
    %189 = vmatprep.subr.mxu0 %v111
    %190 = vmatpush1.msra.mxu0 %v108
    %191 = vmatprep.subr.mxu0 0.0
    %192 = vmatpush1.msra.mxu0 0.0
    %193 = vmatprep.subr.mxu0 0.0
    %194 = vmatpush1.msra.mxu0 0.0
    %195 = vmatprep.subr.mxu0 0.0
    %196 = vmatpush1.msra.mxu0 0.0
    %197 = vmatprep.subr.mxu0 0.0
    %198 = vmatpush1.msra.mxu0 0.0
    %199 = vmatprep.subr.mxu0 0.0
    %200 = vmatpush1.msra.mxu0 0.0
    %201 = vmatprep.subr.mxu0 0.0
    %202 = vmatpush1.msra.mxu0 0.0
    %203 = vmatprep.subr.mxu0 0.0
    %204 = vmatpush1.msra.mxu0 0.0
    %205 = vmatprep.subr.mxu0 0.0
    %206 = vmatpush1.msra.mxu0 0.0
    %207 = vmatprep.subr.mxu0 0.0
    %208 = vmatpush1.msra.mxu0 0.0
    %209 = vmatprep.subr.mxu0 0.0
    %210 = vmatpush1.msra.mxu0 0.0
    %211 = vmatprep.subr.mxu0 0.0
    %212 = vmatpush1.msra.mxu0 0.0
    %213 = vmatprep.subr.mxu0 0.0
    %214 = vmatpush1.msra.mxu0 0.0
    %215 = vmatprep.subr.mxu0 0.0
    %216 = vmatpush1.msra.mxu0 0.0
    %217 = vmatprep.subr.mxu0 0.0
    %218 = vmatpush1.msra.mxu0 0.0
    %219 = vmatprep.subr.mxu0 0.0
    %220 = vmatpush1.msra.mxu0 0.0
    %221 = vmatprep.subr.mxu0 0.0
    %222 = vmatpush1.msra.mxu0 0.0
    %223 = vmatprep.subr.mxu0 0.0
    %224 = vmatpush1.msra.mxu0 0.0
    %225 = vmatprep.subr.mxu0 0.0
    %226 = vmatpush1.msra.mxu0 0.0
    %227 = vmatprep.subr.mxu0 0.0
    %228 = vmatpush1.msra.mxu0 0.0
    %229 = vmatprep.subr.mxu0 0.0
    %230 = vmatpush1.msra.mxu0 0.0
    %231 = vmatprep.subr.mxu0 0.0
    %232 = vmatpush1.msra.mxu0 0.0
    %233 = vmatprep.subr.mxu0 0.0
    %234 = vmatpush1.msra.mxu0 0.0
    %235 = vmatprep.subr.mxu0 0.0
    %236 = vmatpush1.msra.mxu0 0.0
    %237 = vmatprep.subr.mxu0 0.0
    %238 = vmatpush1.msra.mxu0 0.0
    %239 = vmatprep.subr.mxu0 0.0
    %240 = vmatpush1.msra.mxu0 0.0
    %241 = vmatprep.subr.mxu0 0.0
    %242 = vmatpush1.msra.mxu0 0.0
    %243 = vmatprep.subr.mxu0 0.0
    %244 = vmatpush1.msra.mxu0 0.0
    %245 = vmatprep.subr.mxu0 0.0
    %246 = vmatpush1.msra.mxu0 0.0
    %247 = vmatprep.mubr.f32.mxu0 0.0
    %248 = vmatmul.mubr.f32.gmra.mrb[0].mxu0 %v98
    %v249 = vpop.f32.mrb[0].mxu0
    %v250 = vadd.f32 %v88, %v249
    %v251 = vpop.f32.mrb[0].mxu0
    %v252 = vadd.f32 %v92, %v251
    %253 = vdwg.mxu0
    %v254 = vld [vmem:[%s1] sm:$0xff]
    %vm255 = vcmask 261120
    %v257 = vsel %vm255, %v254, 0
    %259 = vmatprep.subr.mxu0 0.0
    %260 = vmatpush1.msra.mxu0 %v48
    %261 = vmatprep.subr.mxu0 0.0
    %262 = vmatpush1.msra.mxu0 %v49
    %263 = vmatprep.subr.mxu0 0.0
    %264 = vmatpush1.msra.mxu0 %v50
    %265 = vmatprep.subr.mxu0 0.0
    %266 = vmatpush1.msra.mxu0 %v51
    %267 = vmatprep.subr.mxu0 0.0
    %268 = vmatpush1.msra.mxu0 0.0
    %269 = vmatprep.subr.mxu0 0.0
    %270 = vmatpush1.msra.mxu0 0.0
    %271 = vmatprep.subr.mxu0 0.0
    %272 = vmatpush1.msra.mxu0 0.0
    %273 = vmatprep.subr.mxu0 0.0
    %274 = vmatpush1.msra.mxu0 0.0
    %275 = vmatprep.subr.mxu0 0.0
    %276 = vmatpush1.msra.mxu0 0.0
    %277 = vmatprep.subr.mxu0 0.0
    %278 = vmatpush1.msra.mxu0 0.0
    %279 = vmatprep.subr.mxu0 0.0
    %280 = vmatpush1.msra.mxu0 0.0
    %281 = vmatprep.subr.mxu0 0.0
    %282 = vmatpush1.msra.mxu0 0.0
    %283 = vmatprep.subr.mxu0 0.0
    %284 = vmatpush1.msra.mxu0 0.0
    %285 = vmatprep.subr.mxu0 0.0
    %286 = vmatpush1.msra.mxu0 0.0
    %287 = vmatprep.subr.mxu0 0.0
    %288 = vmatpush1.msra.mxu0 0.0
    %289 = vmatprep.subr.mxu0 0.0
    %290 = vmatpush1.msra.mxu0 0.0
    %291 = vmatprep.subr.mxu0 0.0
    %292 = vmatpush1.msra.mxu0 0.0
    %293 = vmatprep.subr.mxu0 0.0
    %294 = vmatpush1.msra.mxu0 0.0
    %295 = vmatprep.subr.mxu0 0.0
    %296 = vmatpush1.msra.mxu0 0.0
    %297 = vmatprep.subr.mxu0 0.0
    %298 = vmatpush1.msra.mxu0 0.0
    %299 = vmatprep.subr.mxu0 0.0
    %300 = vmatpush1.msra.mxu0 0.0
    %301 = vmatprep.subr.mxu0 0.0
    %302 = vmatpush1.msra.mxu0 0.0
    %303 = vmatprep.subr.mxu0 0.0
    %304 = vmatpush1.msra.mxu0 0.0
    %305 = vmatprep.subr.mxu0 0.0
    %306 = vmatpush1.msra.mxu0 0.0
    %307 = vmatprep.subr.mxu0 0.0
    %308 = vmatpush1.msra.mxu0 0.0
    %309 = vmatprep.subr.mxu0 0.0
    %310 = vmatpush1.msra.mxu0 0.0
    %311 = vmatprep.subr.mxu0 0.0
    %312 = vmatpush1.msra.mxu0 0.0
    %313 = vmatprep.subr.mxu0 0.0
    %314 = vmatpush1.msra.mxu0 0.0
    %315 = vmatprep.subr.mxu0 0.0
    %316 = vmatpush1.msra.mxu0 0.0
    %317 = vmatprep.subr.mxu0 0.0
    %318 = vmatpush1.msra.mxu0 0.0
    %319 = vmatprep.subr.mxu0 0.0
    %320 = vmatpush1.msra.mxu0 0.0
    %321 = vmatprep.subr.mxu0 0.0
    %322 = vmatpush1.msra.mxu0 0.0
    %323 = vmatprep.mubr.f32.mxu0 0.0
    %324 = vmatmul.mubr.f32.gmra.mrb[0].mxu0 %v257
    %v325 = vpop.f32.mrb[0].mxu0
    %v326 = vadd.f32 0.0, %v325
    %v327 = vpop.f32.mrb[0].mxu0
    %328 = vdwg.mxu0
    %v329 = vadd.f32 %v252, %v326
    %v330 = vxor.u32 %v329, 2147483648
    %v331 = vmul.f32 %v330, 1.442695
    %v332 = vpow.pop %v331
    %v333 = vadd.f32 %v332, 1.0
    %v334 = vrcp.pop %v333
    %v335 = vmul.f32 1.0, %v334
    %v336 = vtanh.pop %v329
    %v337 = vmul.f32 %v335, %v254
    %339 = vrot.lane.b32.xlu0 %v336, 64
    %v340 = vpop.permute.xlu0 %339
    %v342 = vmul.f32 %v335, %v340
    %344 = vrot.lane.b32.xlu0 %v342, 32
    %v345 = vpop.permute.xlu0 %344
    %v347 = vadd.f32 %v337, %v345
    %v348 = vtanh.pop %v347
    %350 = vrot.lane.b32.xlu0 %v348, 64
    %v351 = vpop.permute.xlu0 %350
    %v353 = vmul.f32 %v335, %v351
    %355 = vrot.lane.b32.xlu0 %v353, 32
    %v356 = vpop.permute.xlu0 %355
    %v357 = vsel %vm255, %v356, 0
    %359 = vmatprep.subr.mxu0 0.0
    %360 = vmatpush1.msra.mxu0 %v48
    %361 = vmatprep.subr.mxu0 0.0
    %362 = vmatpush1.msra.mxu0 %v49
    %363 = vmatprep.subr.mxu0 0.0
    %364 = vmatpush1.msra.mxu0 %v50
    %365 = vmatprep.subr.mxu0 0.0
    %366 = vmatpush1.msra.mxu0 %v51
    %367 = vmatprep.subr.mxu0 0.0
    %368 = vmatpush1.msra.mxu0 0.0
    %369 = vmatprep.subr.mxu0 0.0
    %370 = vmatpush1.msra.mxu0 0.0
    %371 = vmatprep.subr.mxu0 0.0
    %372 = vmatpush1.msra.mxu0 0.0
    %373 = vmatprep.subr.mxu0 0.0
    %374 = vmatpush1.msra.mxu0 0.0
    %375 = vmatprep.subr.mxu0 0.0
    %376 = vmatpush1.msra.mxu0 0.0
    %377 = vmatprep.subr.mxu0 0.0
    %378 = vmatpush1.msra.mxu0 0.0
    %379 = vmatprep.subr.mxu0 0.0
    %380 = vmatpush1.msra.mxu0 0.0
    %381 = vmatprep.subr.mxu0 0.0
    %382 = vmatpush1.msra.mxu0 0.0
    %383 = vmatprep.subr.mxu0 0.0
    %384 = vmatpush1.msra.mxu0 0.0
    %385 = vmatprep.subr.mxu0 0.0
    %386 = vmatpush1.msra.mxu0 0.0
    %387 = vmatprep.subr.mxu0 0.0
    %388 = vmatpush1.msra.mxu0 0.0
    %389 = vmatprep.subr.mxu0 0.0
    %390 = vmatpush1.msra.mxu0 0.0
    %391 = vmatprep.subr.mxu0 0.0
    %392 = vmatpush1.msra.mxu0 0.0
    %393 = vmatprep.subr.mxu0 0.0
    %394 = vmatpush1.msra.mxu0 0.0
    %395 = vmatprep.subr.mxu0 0.0
    %396 = vmatpush1.msra.mxu0 0.0
    %397 = vmatprep.subr.mxu0 0.0
    %398 = vmatpush1.msra.mxu0 0.0
    %399 = vmatprep.subr.mxu0 0.0
    %400 = vmatpush1.msra.mxu0 0.0
    %401 = vmatprep.subr.mxu0 0.0
    %402 = vmatpush1.msra.mxu0 0.0
    %403 = vmatprep.subr.mxu0 0.0
    %404 = vmatpush1.msra.mxu0 0.0
    %405 = vmatprep.subr.mxu0 0.0
    %406 = vmatpush1.msra.mxu0 0.0
    %407 = vmatprep.subr.mxu0 0.0
    %408 = vmatpush1.msra.mxu0 0.0
    %409 = vmatprep.subr.mxu0 0.0
    %410 = vmatpush1.msra.mxu0 0.0
    %411 = vmatprep.subr.mxu0 0.0
    %412 = vmatpush1.msra.mxu0 0.0
    %413 = vmatprep.subr.mxu0 0.0
    %414 = vmatpush1.msra.mxu0 0.0
    %415 = vmatprep.subr.mxu0 0.0
    %416 = vmatpush1.msra.mxu0 0.0
    %417 = vmatprep.subr.mxu0 0.0
    %418 = vmatpush1.msra.mxu0 0.0
    %419 = vmatprep.subr.mxu0 0.0
    %420 = vmatpush1.msra.mxu0 0.0
    %421 = vmatprep.subr.mxu0 0.0
    %422 = vmatpush1.msra.mxu0 0.0
    %423 = vmatprep.mubr.f32.mxu0 0.0
    %424 = vmatmul.mubr.f32.gmra.mrb[0].mxu0 %v357
    %v425 = vpop.f32.mrb[0].mxu0
    %v426 = vadd.f32 0.0, %v425
    %v427 = vpop.f32.mrb[0].mxu0
    %428 = vdwg.mxu0
    %v429 = vadd.f32 %v250, %v426
    %v430 = vxor.u32 %v429, 2147483648
    %v431 = vmul.f32 %v430, 1.442695
    %v432 = vpow.pop %v431
    %v433 = vadd.f32 %v432, 1.0
    %v434 = vrcp.pop %v433
    %v435 = vmul.f32 1.0, %v434
    %v436 = vtanh.pop %v429
    %v437 = vmul.f32 %v435, %v347
    %439 = vrot.lane.b32.xlu0 %v436, 64
    %v440 = vpop.permute.xlu0 %439
    %v442 = vmul.f32 %v435, %v440
    %444 = vrot.lane.b32.xlu0 %v442, 32
    %v445 = vpop.permute.xlu0 %444
    %v447 = vadd.f32 %v437, %v445
    %v448 = vtanh.pop %v447
    %450 = vrot.lane.b32.xlu0 %v448, 64
    %v451 = vpop.permute.xlu0 %450
    %v453 = vmul.f32 %v435, %v451
    %455 = vrot.lane.b32.xlu0 %v453, 32
    %v456 = vpop.permute.xlu0 %455
    %v457 = vsel %vm255, %v456, 0
    %459 = vmatprep.subr.mxu0 0.0
    %460 = vmatpush1.msra.mxu0 %v48
    %461 = vmatprep.subr.mxu0 0.0
    %462 = vmatpush1.msra.mxu0 %v49
    %463 = vmatprep.subr.mxu0 0.0
    %464 = vmatpush1.msra.mxu0 %v50
    %465 = vmatprep.subr.mxu0 0.0
    %466 = vmatpush1.msra.mxu0 %v51
    %467 = vmatprep.subr.mxu0 0.0
    %468 = vmatpush1.msra.mxu0 0.0
    %469 = vmatprep.subr.mxu0 0.0
    %470 = vmatpush1.msra.mxu0 0.0
    %471 = vmatprep.subr.mxu0 0.0
    %472 = vmatpush1.msra.mxu0 0.0
    %473 = vmatprep.subr.mxu0 0.0
    %474 = vmatpush1.msra.mxu0 0.0
    %475 = vmatprep.subr.mxu0 0.0
    %476 = vmatpush1.msra.mxu0 0.0
    %477 = vmatprep.subr.mxu0 0.0
    %478 = vmatpush1.msra.mxu0 0.0
    %479 = vmatprep.subr.mxu0 0.0
    %480 = vmatpush1.msra.mxu0 0.0
    %481 = vmatprep.subr.mxu0 0.0
    %482 = vmatpush1.msra.mxu0 0.0
    %483 = vmatprep.subr.mxu0 0.0
    %484 = vmatpush1.msra.mxu0 0.0
    %485 = vmatprep.subr.mxu0 0.0
    %486 = vmatpush1.msra.mxu0 0.0
    %487 = vmatprep.subr.mxu0 0.0
    %488 = vmatpush1.msra.mxu0 0.0
    %489 = vmatprep.subr.mxu0 0.0
    %490 = vmatpush1.msra.mxu0 0.0
    %491 = vmatprep.subr.mxu0 0.0
    %492 = vmatpush1.msra.mxu0 0.0
    %493 = vmatprep.subr.mxu0 0.0
    %494 = vmatpush1.msra.mxu0 0.0
    %495 = vmatprep.subr.mxu0 0.0
    %496 = vmatpush1.msra.mxu0 0.0
    %497 = vmatprep.subr.mxu0 0.0
    %498 = vmatpush1.msra.mxu0 0.0
    %499 = vmatprep.subr.mxu0 0.0
    %500 = vmatpush1.msra.mxu0 0.0
    %501 = vmatprep.subr.mxu0 0.0
    %502 = vmatpush1.msra.mxu0 0.0
    %503 = vmatprep.subr.mxu0 0.0
    %504 = vmatpush1.msra.mxu0 0.0
    %505 = vmatprep.subr.mxu0 0.0
    %506 = vmatpush1.msra.mxu0 0.0
    %507 = vmatprep.subr.mxu0 0.0
    %508 = vmatpush1.msra.mxu0 0.0
    %509 = vmatprep.subr.mxu0 0.0
    %510 = vmatpush1.msra.mxu0 0.0
    %511 = vmatprep.subr.mxu0 0.0
    %512 = vmatpush1.msra.mxu0 0.0
    %513 = vmatprep.subr.mxu0 0.0
    %514 = vmatpush1.msra.mxu0 0.0
    %515 = vmatprep.subr.mxu0 0.0
    %516 = vmatpush1.msra.mxu0 0.0
    %517 = vmatprep.subr.mxu0 0.0
    %518 = vmatpush1.msra.mxu0 0.0
    %519 = vmatprep.subr.mxu0 0.0
    %520 = vmatpush1.msra.mxu0 0.0
    %521 = vmatprep.subr.mxu0 0.0
    %522 = vmatpush1.msra.mxu0 0.0
    %523 = vmatprep.mubr.f32.mxu0 0.0
    %524 = vmatmul.mubr.f32.gmra.mrb[0].mxu0 %v457
    %v525 = vpop.f32.mrb[0].mxu0
    %v526 = vadd.f32 0.0, %v525
    %v527 = vpop.f32.mrb[0].mxu0
    %528 = vdwg.mxu0
    %v529 = vadd.f32 %v181, %v526
    %v530 = vxor.u32 %v529, 2147483648
    %v531 = vmul.f32 %v530, 1.442695
    %v532 = vpow.pop %v531
    %v533 = vadd.f32 %v532, 1.0
    %v534 = vrcp.pop %v533
    %v535 = vmul.f32 1.0, %v534
    %v536 = vtanh.pop %v529
    %v537 = vmul.f32 %v535, %v447
    %539 = vrot.lane.b32.xlu0 %v536, 64
    %v540 = vpop.permute.xlu0 %539
    %v542 = vmul.f32 %v535, %v540
    %544 = vrot.lane.b32.xlu0 %v542, 32
    %v545 = vpop.permute.xlu0 %544
    %v547 = vadd.f32 %v537, %v545
    %v548 = vtanh.pop %v547
    %550 = vrot.lane.b32.xlu0 %v548, 64
    %v551 = vpop.permute.xlu0 %550
    %v553 = vmul.f32 %v535, %v551
    %v555 = vlaneseq
    %v556 = vshrl.u32 %v555, 7
    %v557 = vsub.s32 0, %v556
    %v558 = vrot.slane %v61, %v557
    %561 = vrot.lane.b32.xlu0 %v553, 32
    %v562 = vpop.permute.xlu0 %561
    %v563 = vsel %vm255, %v562, 0
    %565 = vmatprep.subr.mxu0 0.0
    %566 = vmatpush1.msra.mxu0 %v52
    %567 = vmatprep.subr.mxu0 0.0
    %568 = vmatpush1.msra.mxu0 %v53
    %569 = vmatprep.subr.mxu0 0.0
    %570 = vmatpush1.msra.mxu0 %v54
    %571 = vmatprep.subr.mxu0 0.0
    %572 = vmatpush1.msra.mxu0 %v55
    %573 = vmatprep.subr.mxu0 0.0
    %574 = vmatpush1.msra.mxu0 0.0
    %575 = vmatprep.subr.mxu0 0.0
    %576 = vmatpush1.msra.mxu0 0.0
    %577 = vmatprep.subr.mxu0 0.0
    %578 = vmatpush1.msra.mxu0 0.0
    %579 = vmatprep.subr.mxu0 0.0
    %580 = vmatpush1.msra.mxu0 0.0
    %581 = vmatprep.subr.mxu0 0.0
    %582 = vmatpush1.msra.mxu0 0.0
    %583 = vmatprep.subr.mxu0 0.0
    %584 = vmatpush1.msra.mxu0 0.0
    %585 = vmatprep.subr.mxu0 0.0
    %586 = vmatpush1.msra.mxu0 0.0
    %587 = vmatprep.subr.mxu0 0.0
    %588 = vmatpush1.msra.mxu0 0.0
    %589 = vmatprep.subr.mxu0 0.0
    %590 = vmatpush1.msra.mxu0 0.0
    %591 = vmatprep.subr.mxu0 0.0
    %592 = vmatpush1.msra.mxu0 0.0
    %593 = vmatprep.subr.mxu0 0.0
    %594 = vmatpush1.msra.mxu0 0.0
    %595 = vmatprep.subr.mxu0 0.0
    %596 = vmatpush1.msra.mxu0 0.0
    %597 = vmatprep.subr.mxu0 0.0
    %598 = vmatpush1.msra.mxu0 0.0
    %599 = vmatprep.subr.mxu0 0.0
    %600 = vmatpush1.msra.mxu0 0.0
    %601 = vmatprep.subr.mxu0 0.0
    %602 = vmatpush1.msra.mxu0 0.0
    %603 = vmatprep.subr.mxu0 0.0
    %604 = vmatpush1.msra.mxu0 0.0
    %605 = vmatprep.subr.mxu0 0.0
    %606 = vmatpush1.msra.mxu0 0.0
    %607 = vmatprep.subr.mxu0 0.0
    %608 = vmatpush1.msra.mxu0 0.0
    %609 = vmatprep.subr.mxu0 0.0
    %610 = vmatpush1.msra.mxu0 0.0
    %611 = vmatprep.subr.mxu0 0.0
    %612 = vmatpush1.msra.mxu0 0.0
    %613 = vmatprep.subr.mxu0 0.0
    %614 = vmatpush1.msra.mxu0 0.0
    %615 = vmatprep.subr.mxu0 0.0
    %616 = vmatpush1.msra.mxu0 0.0
    %617 = vmatprep.subr.mxu0 0.0
    %618 = vmatpush1.msra.mxu0 0.0
    %619 = vmatprep.subr.mxu0 0.0
    %620 = vmatpush1.msra.mxu0 0.0
    %621 = vmatprep.subr.mxu0 0.0
    %622 = vmatpush1.msra.mxu0 0.0
    %623 = vmatprep.subr.mxu0 0.0
    %624 = vmatpush1.msra.mxu0 0.0
    %625 = vmatprep.subr.mxu0 0.0
    %626 = vmatpush1.msra.mxu0 0.0
    %627 = vmatprep.subr.mxu0 0.0
    %628 = vmatpush1.msra.mxu0 0.0
    %629 = vmatprep.mubr.f32.mxu0 0.0
    %630 = vmatmul.mubr.f32.gmra.mrb[0].mxu0 %v563
    %v631 = vpop.f32.mrb[0].mxu0
    %v632 = vadd.f32 %v558, %v631
    %v633 = vpop.f32.mrb[0].mxu0
    %634 = vdwg.mxu0
    %v635 = vmax.f32 %v632, 0.0
    %v637 = vlaneseq
    %v638 = vshrl.u32 %v637, 7
    %v639 = vsub.s32 0, %v638
    %v640 = vrot.slane %v62, %v639
    %v643 = vsel %vm255, %v635, 0
    %645 = vmatprep.subr.mxu0 0.0
    %646 = vmatpush1.msra.mxu0 %v56
    %647 = vmatprep.subr.mxu0 0.0
    %648 = vmatpush1.msra.mxu0 %v57
    %649 = vmatprep.subr.mxu0 0.0
    %650 = vmatpush1.msra.mxu0 %v58
    %651 = vmatprep.subr.mxu0 0.0
    %652 = vmatpush1.msra.mxu0 %v59
    %653 = vmatprep.subr.mxu0 0.0
    %654 = vmatpush1.msra.mxu0 0.0
    %655 = vmatprep.subr.mxu0 0.0
    %656 = vmatpush1.msra.mxu0 0.0
    %657 = vmatprep.subr.mxu0 0.0
    %658 = vmatpush1.msra.mxu0 0.0
    %659 = vmatprep.subr.mxu0 0.0
    %660 = vmatpush1.msra.mxu0 0.0
    %661 = vmatprep.subr.mxu0 0.0
    %662 = vmatpush1.msra.mxu0 0.0
    %663 = vmatprep.subr.mxu0 0.0
    %664 = vmatpush1.msra.mxu0 0.0
    %665 = vmatprep.subr.mxu0 0.0
    %666 = vmatpush1.msra.mxu0 0.0
    %667 = vmatprep.subr.mxu0 0.0
    %668 = vmatpush1.msra.mxu0 0.0
    %669 = vmatprep.subr.mxu0 0.0
    %670 = vmatpush1.msra.mxu0 0.0
    %671 = vmatprep.subr.mxu0 0.0
    %672 = vmatpush1.msra.mxu0 0.0
    %673 = vmatprep.subr.mxu0 0.0
    %674 = vmatpush1.msra.mxu0 0.0
    %675 = vmatprep.subr.mxu0 0.0
    %676 = vmatpush1.msra.mxu0 0.0
    %677 = vmatprep.subr.mxu0 0.0
    %678 = vmatpush1.msra.mxu0 0.0
    %679 = vmatprep.subr.mxu0 0.0
    %680 = vmatpush1.msra.mxu0 0.0
    %681 = vmatprep.subr.mxu0 0.0
    %682 = vmatpush1.msra.mxu0 0.0
    %683 = vmatprep.subr.mxu0 0.0
    %684 = vmatpush1.msra.mxu0 0.0
    %685 = vmatprep.subr.mxu0 0.0
    %686 = vmatpush1.msra.mxu0 0.0
    %687 = vmatprep.subr.mxu0 0.0
    %688 = vmatpush1.msra.mxu0 0.0
    %689 = vmatprep.subr.mxu0 0.0
    %690 = vmatpush1.msra.mxu0 0.0
    %691 = vmatprep.subr.mxu0 0.0
    %692 = vmatpush1.msra.mxu0 0.0
    %693 = vmatprep.subr.mxu0 0.0
    %694 = vmatpush1.msra.mxu0 0.0
    %695 = vmatprep.subr.mxu0 0.0
    %696 = vmatpush1.msra.mxu0 0.0
    %697 = vmatprep.subr.mxu0 0.0
    %698 = vmatpush1.msra.mxu0 0.0
    %699 = vmatprep.subr.mxu0 0.0
    %700 = vmatpush1.msra.mxu0 0.0
    %701 = vmatprep.subr.mxu0 0.0
    %702 = vmatpush1.msra.mxu0 0.0
    %703 = vmatprep.subr.mxu0 0.0
    %704 = vmatpush1.msra.mxu0 0.0
    %705 = vmatprep.subr.mxu0 0.0
    %706 = vmatpush1.msra.mxu0 0.0
    %707 = vmatprep.subr.mxu0 0.0
    %708 = vmatpush1.msra.mxu0 0.0
    %709 = vmatprep.mubr.f32.mxu0 0.0
    %710 = vmatmul.mubr.f32.gmra.mrb[0].mxu0 %v643
    %v711 = vpop.f32.mrb[0].mxu0
    %v712 = vadd.f32 %v640, %v711
    %v713 = vpop.f32.mrb[0].mxu0
    %714 = vdwg.mxu0
    %v715 = vtanh.pop %v712
    %v716 = vmul.f32 %v715, 2.0
    %718 = vst.msk [vmem:[%s5] sm:$0xff] %vm255, %v562
    %720 = vrot.lane.b32.xlu0 %v547, 96
    %v721 = vpop.permute.xlu0 %720
    %723 = vst.msk [vmem:[%s5 + $0x8] sm:$0xff] %vm255, %v721
    %vm724 = vcmask 23552
    %725 = vst.msk [vmem:[%s5 + $0x10] sm:$0xff] %vm724, %v716
    // Predicated region
    $region30: #{actor_forward.1} parent=1 // pred_check
      _
    $region31: #{actor_forward.1} parent=1 // pred_check_branch
      %727 = sbr.rel (0) target = $region33
    $region32: #{actor_forward.1} parent=1 // pred_region
      _
    $region33: #{actor_forward.1} parent=1 // pred_fallthru
      _
    // Predicated region
    $region34: #{actor_forward.1} parent=1 // pred_check
      _
    $region35: #{actor_forward.1} parent=1 // pred_check_branch
      %729 = sbr.rel (0) target = $region37
    $region36: #{actor_forward.1} parent=1 // pred_region
      _
    $region37: #{actor_forward.1} parent=1 // pred_fallthru
      _
    %730 = vsyncpa [#allocation3], 1
    %731 = vsyncpa [#allocation5], 1

</llo_original>
